<compile_context>
chip_gen: v7x
topology: tpu7x:2x2x1
jax: 0.10.0
libtpu: 0.0.40
codegen_flags: <defaults>
</compile_context>

<pallas_src>
import functools

import jax
import jax.numpy as jnp
from jax.experimental import pallas as pl
from jax.experimental.pallas import tpu as pltpu

C_IN = 128          # Conv1d input channels (fixed by the module)
C_MID1 = 64
C_MID2 = 128
EMB_DIMS = 256      # args.emb_dims
BN_EPS = 1e-5
LEAKY_SLOPE = 0.2


def _leaky_relu(x):
    return jnp.where(x >= 0, x, LEAKY_SLOPE * x)


def distance_net_kernel(x_ref,                    # (1, 2*tm, 128) bf16: [x1 rows; x2 rows]
                        w1_ref, b1_ref,           # (128, 64) bf16, (1, 64) f32 (BN folded)
                        w2_ref, b2_ref,           # (64, 128) bf16, (1, 128) f32
                        w3_ref, b3_ref,           # (128, E)  bf16, (1, E)   f32
                        wfa_ref, wfb_ref, bf_ref,  # (1, E) f32, (1, E) f32, (1, 1) f32
                        out_ref):                 # (tm, 1) f32
    tm = x_ref.shape[1] // 2
    x = x_ref[0]                                  # (2*tm, 128), x1 rows then x2 rows

    # Shared tower, run ONCE on the stacked rows.  BN scale is pre-folded into
    # the weights; bias add + LeakyReLU stay in-kernel.
    h = jnp.dot(x, w1_ref[...], preferred_element_type=jnp.float32)
    h = _leaky_relu(h + b1_ref[...])
    h = jnp.dot(h.astype(jnp.bfloat16), w2_ref[...], preferred_element_type=jnp.float32)
    h = _leaky_relu(h + b2_ref[...])
    h = jnp.dot(h.astype(jnp.bfloat16), w3_ref[...], preferred_element_type=jnp.float32)
    h = _leaky_relu(h + b3_ref[...])              # (2*tm, E) f32

    f1 = h[:tm]                                   # features of input1 rows
    f2 = h[tm:]                                   # features of input2 rows

    # TODO(synk): nn.Dropout() is identity in eval mode; training-mode random
    # dropout is not implemented here.

    # fc1 over concat([f1, f2], axis=1): elementwise multiply + lane reduction
    # on the VPU/XLU (keeps the MXU free for the tower matmuls).
    y = jnp.sum(f1 * wfa_ref[...] + f2 * wfb_ref[...], axis=-1, keepdims=True)
    out_ref[...] = (y + bf_ref[...]).astype(out_ref.dtype)


def init_params(key, emb_dims=EMB_DIMS):
    """Deterministic synthetic parameters in PyTorch layout (eval-mode BN)."""
    ks = jax.random.split(key, 8)

    def conv_w(k, c_out, c_in):
        # PyTorch Conv1d weight layout: (c_out, c_in, 1).
        return jax.random.normal(k, (c_out, c_in, 1), jnp.float32) / jnp.sqrt(c_in)

    def bn(k, c):
        kg, kb, km, kv = jax.random.split(k, 4)
        return dict(
            gamma=1.0 + 0.1 * jax.random.normal(kg, (c,), jnp.float32),
            beta=0.1 * jax.random.normal(kb, (c,), jnp.float32),
            mean=0.1 * jax.random.normal(km, (c,), jnp.float32),
            var=jnp.abs(1.0 + 0.1 * jax.random.normal(kv, (c,), jnp.float32)),
        )

    return dict(
        conv1_w=conv_w(ks[0], C_MID1, C_IN), bn1=bn(ks[1], C_MID1),
        conv2_w=conv_w(ks[2], C_MID2, C_MID1), bn2=bn(ks[3], C_MID2),
        conv3_w=conv_w(ks[4], emb_dims, C_MID2), bn3=bn(ks[5], emb_dims),
        fc1_w=jax.random.normal(ks[6], (1, 2 * emb_dims), jnp.float32)
        / jnp.sqrt(2 * emb_dims),
        fc1_b=0.1 * jax.random.normal(ks[7], (1,), jnp.float32),
    )


def fold_params(p, emb_dims=EMB_DIMS):
    """Fold eval-mode BatchNorm into the k=1 conv weights; kernel-ready layout."""
    def fold(conv_w, bn):
        scale = bn["gamma"] / jnp.sqrt(bn["var"] + BN_EPS)        # (C_out,)
        shift = bn["beta"] - bn["mean"] * scale                   # (C_out,)
        w = conv_w[:, :, 0].T * scale[None, :]                    # (C_in, C_out)
        return w.astype(jnp.bfloat16), shift[None, :].astype(jnp.float32)

    w1, b1 = fold(p["conv1_w"], p["bn1"])
    w2, b2 = fold(p["conv2_w"], p["bn2"])
    w3, b3 = fold(p["conv3_w"], p["bn3"])
    wf = p["fc1_w"].astype(jnp.float32)                           # (1, 2E)
    return dict(
        w1=w1, b1=b1, w2=w2, b2=b2, w3=w3, b3=b3,
        wfa=wf[:, :emb_dims], wfb=wf[:, emb_dims:],
        bf=p["fc1_b"].reshape(1, 1).astype(jnp.float32),
    )


def _round_up(x, m):
    return ((x + m - 1) // m) * m


@functools.partial(jax.jit, static_argnames=("block_b",))
def distance_net_forward(input1, input2, fp, *, block_b=1024):
    """input1, input2: (B, 128, 1) in PyTorch NCW layout."""
    B, C, N = input1.shape
    assert C == C_IN and N == 1, "module's squeeze(2)/fc1 require seq length 1"
    emb = fp["w3"].shape[1]

    tm = min(block_b, _round_up(B, 8))            # batch tile (sublane-aligned)
    b_pad = _round_up(B, tm)
    g = b_pad // tm

    x1 = input1[:, :, 0].astype(jnp.bfloat16)     # (B, 128) channels-last
    x2 = input2[:, :, 0].astype(jnp.bfloat16)
    if b_pad != B:
        pad = ((0, b_pad - B), (0, 0))
        x1 = jnp.pad(x1, pad)
        x2 = jnp.pad(x2, pad)
    # Pack per-tile: xs[i] = [x1 rows of tile i ; x2 rows of tile i] -> (g, 2*tm, 128)
    xs = jnp.concatenate(
        [x1.reshape(g, tm, C_IN), x2.reshape(g, tm, C_IN)], axis=1)

    const = lambda i: (0, 0)                      # weights stay VMEM-resident
    out = pl.pallas_call(
        distance_net_kernel,
        out_shape=jax.ShapeDtypeStruct((b_pad, 1), jnp.float32),
        grid=(g,),
        in_specs=[
            pl.BlockSpec((1, 2 * tm, C_IN), lambda i: (i, 0, 0)),   # xs
            pl.BlockSpec((C_IN, C_MID1), const),                    # w1
            pl.BlockSpec((1, C_MID1), const),                       # b1
            pl.BlockSpec((C_MID1, C_MID2), const),                  # w2
            pl.BlockSpec((1, C_MID2), const),                       # b2
            pl.BlockSpec((C_MID2, emb), const),                     # w3
            pl.BlockSpec((1, emb), const),                          # b3
            pl.BlockSpec((1, emb), const),                          # wfa
            pl.BlockSpec((1, emb), const),                          # wfb
            pl.BlockSpec((1, 1), const),                            # bf
        ],
        out_specs=pl.BlockSpec((tm, 1), lambda i: (i, 0)),
        compiler_params=pltpu.CompilerParams(
            dimension_semantics=("parallel",),          # megacore on v7x
            vmem_limit_bytes=32 * 1024 * 1024,
        ),
    )(xs, fp["w1"], fp["b1"], fp["w2"], fp["b2"], fp["w3"], fp["b3"],
      fp["wfa"], fp["wfb"], fp["bf"])
    return out[:B]


def reference_forward(input1, input2, fp):
    """Plain-JAX reference using the same folded/bf16 parameters."""
    def tower(x):
        h = _leaky_relu(jnp.dot(x.astype(jnp.bfloat16), fp["w1"],
                                preferred_element_type=jnp.float32) + fp["b1"])
        h = _leaky_relu(jnp.dot(h.astype(jnp.bfloat16), fp["w2"],
                                preferred_element_type=jnp.float32) + fp["b2"])
        h = _leaky_relu(jnp.dot(h.astype(jnp.bfloat16), fp["w3"],
                                preferred_element_type=jnp.float32) + fp["b3"])
        return h
    f1 = tower(input1[:, :, 0])
    f2 = tower(input2[:, :, 0])
    return jnp.sum(f1 * fp["wfa"] + f2 * fp["wfb"], axis=-1, keepdims=True) + fp["bf"]


if __name__ == "__main__":
    key = jax.random.PRNGKey(0)
    k_in1, k_in2, k_param = jax.random.split(key, 3)

    B = 8
    input1 = jax.random.normal(k_in1, (B, C_IN, 1), jnp.float32)
    input2 = jax.random.normal(k_in2, (B, C_IN, 1), jnp.float32)
    params = fold_params(init_params(k_param, EMB_DIMS), EMB_DIMS)

    out = jax.block_until_ready(distance_net_forward(input1, input2, params))
    ref = jax.block_until_ready(reference_forward(input1, input2, params))

    assert out.shape == (B, 1)
    assert jnp.allclose(out, ref, atol=2e-2, rtol=2e-2), "mismatch vs JAX reference"

    print("KERNEL_OK")
</pallas_src>

<mosaic_0001>
module attributes {stable_mosaic.version = 11 : i64} {
  func.func @distance_net_kernel(%arg0: i32, %arg1: memref<1x16x128xbf16, #tpu.memory_space<vmem>>, %arg2: memref<128x64xbf16, #tpu.memory_space<vmem>>, %arg3: memref<1x64xf32, #tpu.memory_space<vmem>>, %arg4: memref<64x128xbf16, #tpu.memory_space<vmem>>, %arg5: memref<1x128xf32, #tpu.memory_space<vmem>>, %arg6: memref<128x256xbf16, #tpu.memory_space<vmem>>, %arg7: memref<1x256xf32, #tpu.memory_space<vmem>>, %arg8: memref<1x256xf32, #tpu.memory_space<vmem>>, %arg9: memref<1x256xf32, #tpu.memory_space<vmem>>, %arg10: memref<1x1xf32, #tpu.memory_space<vmem>>, %arg11: memref<8x1xf32, #tpu.memory_space<vmem>>) attributes {dimension_semantics = [#tpu.dimension_semantics<parallel>], iteration_bounds = array<i64: 1>, scalar_prefetch = 0 : i64, scratch_operands = 0 : i64, tpu.core_type = #tpu.core_type<tc>, window_params = [{transform_indices = @transform_0, window_bounds = array<i64: 1, 16, 128>}, {pipeline_mode = #tpu.pipeline_mode<synchronous>, transform_indices = @transform_1, window_bounds = array<i64: 128, 64>}, {pipeline_mode = #tpu.pipeline_mode<synchronous>, transform_indices = @transform_2, window_bounds = array<i64: 1, 64>}, {pipeline_mode = #tpu.pipeline_mode<synchronous>, transform_indices = @transform_3, window_bounds = array<i64: 64, 128>}, {pipeline_mode = #tpu.pipeline_mode<synchronous>, transform_indices = @transform_4, window_bounds = array<i64: 1, 128>}, {pipeline_mode = #tpu.pipeline_mode<synchronous>, transform_indices = @transform_5, window_bounds = array<i64: 128, 256>}, {pipeline_mode = #tpu.pipeline_mode<synchronous>, transform_indices = @transform_6, window_bounds = array<i64: 1, 256>}, {pipeline_mode = #tpu.pipeline_mode<synchronous>, transform_indices = @transform_7, window_bounds = array<i64: 1, 256>}, {pipeline_mode = #tpu.pipeline_mode<synchronous>, transform_indices = @transform_8, window_bounds = array<i64: 1, 256>}, {pipeline_mode = #tpu.pipeline_mode<synchronous>, transform_indices = @transform_9, window_bounds = array<i64: 1, 1>}, {transform_indices = @transform_10, window_bounds = array<i64: 8, 1>}]} {
    %c0 = arith.constant 0 : index
    %c0_0 = arith.constant 0 : index
    %c0_1 = arith.constant 0 : index
    %0 = vector.load %arg1[%c0, %c0_0, %c0_1] : memref<1x16x128xbf16, #tpu.memory_space<vmem>>, vector<1x16x128xbf16>
    %1 = vector.shape_cast %0 : vector<1x16x128xbf16> to vector<16x128xbf16>
    %c0_2 = arith.constant 0 : index
    %c0_3 = arith.constant 0 : index
    %2 = vector.load %arg2[%c0_2, %c0_3] : memref<128x64xbf16, #tpu.memory_space<vmem>>, vector<128x64xbf16>
    %cst = arith.constant dense<0.000000e+00> : vector<16x64xf32>
    %3 = tpu.matmul %1, %2, %cst {dimension_numbers = #tpu.dot_dimension_numbers<[1], [0], [0], [1], [0, 0, 1, 1], [], []>} : vector<16x128xbf16>, vector<128x64xbf16>, vector<16x64xf32> -> vector<16x64xf32>
    %c0_4 = arith.constant 0 : index
    %c0_5 = arith.constant 0 : index
    %4 = vector.load %arg3[%c0_4, %c0_5] : memref<1x64xf32, #tpu.memory_space<vmem>>, vector<1x64xf32>
    %5 = vector.broadcast %4 : vector<1x64xf32> to vector<16x64xf32>
    %6 = arith.addf %3, %5 : vector<16x64xf32>
    %cst_6 = arith.constant 0.000000e+00 : f32
    %7 = vector.broadcast %cst_6 : f32 to vector<16x64xf32>
    %8 = arith.cmpf oge, %6, %7 : vector<16x64xf32>
    %cst_7 = arith.constant 2.000000e-01 : f32
    %9 = vector.broadcast %cst_7 : f32 to vector<16x64xf32>
    %10 = arith.mulf %9, %6 : vector<16x64xf32>
    %11 = arith.select %8, %6, %10 : vector<16x64xi1>, vector<16x64xf32>
    %12 = arith.truncf %11 : vector<16x64xf32> to vector<16x64xbf16>
    %c0_8 = arith.constant 0 : index
    %c0_9 = arith.constant 0 : index
    %13 = vector.load %arg4[%c0_8, %c0_9] : memref<64x128xbf16, #tpu.memory_space<vmem>>, vector<64x128xbf16>
    %cst_10 = arith.constant dense<0.000000e+00> : vector<16x128xf32>
    %14 = tpu.matmul %12, %13, %cst_10 {dimension_numbers = #tpu.dot_dimension_numbers<[1], [0], [0], [1], [0, 0, 1, 1], [], []>} : vector<16x64xbf16>, vector<64x128xbf16>, vector<16x128xf32> -> vector<16x128xf32>
    %c0_11 = arith.constant 0 : index
    %c0_12 = arith.constant 0 : index
    %15 = vector.load %arg5[%c0_11, %c0_12] : memref<1x128xf32, #tpu.memory_space<vmem>>, vector<1x128xf32>
    %16 = vector.broadcast %15 : vector<1x128xf32> to vector<16x128xf32>
    %17 = arith.addf %14, %16 : vector<16x128xf32>
    %cst_13 = arith.constant 0.000000e+00 : f32
    %18 = vector.broadcast %cst_13 : f32 to vector<16x128xf32>
    %19 = arith.cmpf oge, %17, %18 : vector<16x128xf32>
    %cst_14 = arith.constant 2.000000e-01 : f32
    %20 = vector.broadcast %cst_14 : f32 to vector<16x128xf32>
    %21 = arith.mulf %20, %17 : vector<16x128xf32>
    %22 = arith.select %19, %17, %21 : vector<16x128xi1>, vector<16x128xf32>
    %23 = arith.truncf %22 : vector<16x128xf32> to vector<16x128xbf16>
    %c0_15 = arith.constant 0 : index
    %c0_16 = arith.constant 0 : index
    %24 = vector.load %arg6[%c0_15, %c0_16] : memref<128x256xbf16, #tpu.memory_space<vmem>>, vector<128x256xbf16>
    %cst_17 = arith.constant dense<0.000000e+00> : vector<16x256xf32>
    %25 = tpu.matmul %23, %24, %cst_17 {dimension_numbers = #tpu.dot_dimension_numbers<[1], [0], [0], [1], [0, 0, 1, 1], [], []>} : vector<16x128xbf16>, vector<128x256xbf16>, vector<16x256xf32> -> vector<16x256xf32>
    %c0_18 = arith.constant 0 : index
    %c0_19 = arith.constant 0 : index
    %26 = vector.load %arg7[%c0_18, %c0_19] : memref<1x256xf32, #tpu.memory_space<vmem>>, vector<1x256xf32>
    %27 = vector.broadcast %26 : vector<1x256xf32> to vector<16x256xf32>
    %28 = arith.addf %25, %27 : vector<16x256xf32>
    %cst_20 = arith.constant 0.000000e+00 : f32
    %29 = vector.broadcast %cst_20 : f32 to vector<16x256xf32>
    %30 = arith.cmpf oge, %28, %29 : vector<16x256xf32>
    %cst_21 = arith.constant 2.000000e-01 : f32
    %31 = vector.broadcast %cst_21 : f32 to vector<16x256xf32>
    %32 = arith.mulf %31, %28 : vector<16x256xf32>
    %33 = arith.select %30, %28, %32 : vector<16x256xi1>, vector<16x256xf32>
    %34 = vector.extract_strided_slice %33 {offsets = [0, 0], sizes = [8, 256], strides = [1, 1]} : vector<16x256xf32> to vector<8x256xf32>
    %35 = vector.extract_strided_slice %33 {offsets = [8, 0], sizes = [8, 256], strides = [1, 1]} : vector<16x256xf32> to vector<8x256xf32>
    %c0_22 = arith.constant 0 : index
    %c0_23 = arith.constant 0 : index
    %36 = vector.load %arg8[%c0_22, %c0_23] : memref<1x256xf32, #tpu.memory_space<vmem>>, vector<1x256xf32>
    %37 = vector.broadcast %36 : vector<1x256xf32> to vector<8x256xf32>
    %38 = arith.mulf %34, %37 : vector<8x256xf32>
    %c0_24 = arith.constant 0 : index
    %c0_25 = arith.constant 0 : index
    %39 = vector.load %arg9[%c0_24, %c0_25] : memref<1x256xf32, #tpu.memory_space<vmem>>, vector<1x256xf32>
    %40 = vector.broadcast %39 : vector<1x256xf32> to vector<8x256xf32>
    %41 = arith.mulf %35, %40 : vector<8x256xf32>
    %42 = arith.addf %38, %41 : vector<8x256xf32>
    %cst_26 = arith.constant dense<0.000000e+00> : vector<8xf32>
    %43 = vector.multi_reduction <add>, %42, %cst_26 [1] : vector<8x256xf32> to vector<8xf32>
    %44 = vector.shape_cast %43 : vector<8xf32> to vector<8x1xf32>
    %c0_27 = arith.constant 0 : index
    %c0_28 = arith.constant 0 : index
    %45 = vector.load %arg10[%c0_27, %c0_28] : memref<1x1xf32, #tpu.memory_space<vmem>>, vector<1x1xf32>
    %46 = vector.broadcast %45 : vector<1x1xf32> to vector<8x1xf32>
    %47 = arith.addf %44, %46 : vector<8x1xf32>
    %c0_29 = arith.constant 0 : index
    %c0_30 = arith.constant 0 : index
    %48 = vector.load %arg11[%c0_29, %c0_30] : memref<8x1xf32, #tpu.memory_space<vmem>>, vector<8x1xf32>
    tpu.vector_store %arg11[%c0_29, %c0_30], %47 {strides = array<i32>} : memref<8x1xf32, #tpu.memory_space<vmem>>, vector<8x1xf32>,
    return
  }
  func.func @transform_0(%arg0: i32) -> (i32, i32, i32) {
    %c0_i32 = arith.constant 0 : i32
    %c0_i32_0 = arith.constant 0 : i32
    %c0_i32_1 = arith.constant 0 : i32
    return %arg0, %c0_i32, %c0_i32_0 : i32, i32, i32
  }
  func.func @transform_1(%arg0: i32) -> (i32, i32) {
    %c0_i32 = arith.constant 0 : i32
    %c0_i32_0 = arith.constant 0 : i32
    %c0_i32_1 = arith.constant 0 : i32
    return %c0_i32, %c0_i32_0 : i32, i32
  }
  func.func @transform_2(%arg0: i32) -> (i32, i32) {
    %c0_i32 = arith.constant 0 : i32
    %c0_i32_0 = arith.constant 0 : i32
    %c0_i32_1 = arith.constant 0 : i32
    return %c0_i32, %c0_i32_0 : i32, i32
  }
  func.func @transform_3(%arg0: i32) -> (i32, i32) {
    %c0_i32 = arith.constant 0 : i32
    %c0_i32_0 = arith.constant 0 : i32
    %c0_i32_1 = arith.constant 0 : i32
    return %c0_i32, %c0_i32_0 : i32, i32
  }
  func.func @transform_4(%arg0: i32) -> (i32, i32) {
    %c0_i32 = arith.constant 0 : i32
    %c0_i32_0 = arith.constant 0 : i32
    %c0_i32_1 = arith.constant 0 : i32
    return %c0_i32, %c0_i32_0 : i32, i32
  }
  func.func @transform_5(%arg0: i32) -> (i32, i32) {
    %c0_i32 = arith.constant 0 : i32
    %c0_i32_0 = arith.constant 0 : i32
    %c0_i32_1 = arith.constant 0 : i32
    return %c0_i32, %c0_i32_0 : i32, i32
  }
  func.func @transform_6(%arg0: i32) -> (i32, i32) {
    %c0_i32 = arith.constant 0 : i32
    %c0_i32_0 = arith.constant 0 : i32
    %c0_i32_1 = arith.constant 0 : i32
    return %c0_i32, %c0_i32_0 : i32, i32
  }
  func.func @transform_7(%arg0: i32) -> (i32, i32) {
    %c0_i32 = arith.constant 0 : i32
    %c0_i32_0 = arith.constant 0 : i32
    %c0_i32_1 = arith.constant 0 : i32
    return %c0_i32, %c0_i32_0 : i32, i32
  }
  func.func @transform_8(%arg0: i32) -> (i32, i32) {
    %c0_i32 = arith.constant 0 : i32
    %c0_i32_0 = arith.constant 0 : i32
    %c0_i32_1 = arith.constant 0 : i32
    return %c0_i32, %c0_i32_0 : i32, i32
  }
  func.func @transform_9(%arg0: i32) -> (i32, i32) {
    %c0_i32 = arith.constant 0 : i32
    %c0_i32_0 = arith.constant 0 : i32
    %c0_i32_1 = arith.constant 0 : i32
    return %c0_i32, %c0_i32_0 : i32, i32
  }
  func.func @transform_10(%arg0: i32) -> (i32, i32) {
    %c0_i32 = arith.constant 0 : i32
    %c0_i32_0 = arith.constant 0 : i32
    return %arg0, %c0_i32 : i32, i32
  }
}

</mosaic_0001>

<llo_original>
// kernel: distance_net_forward.1
$region0: #{distance_net_forward.1}
  #allocation0 [shape = 'u32[]', space=smem, size = 0x4, offset = 0x4, fixed_abs, tag = 'smem constant byte address 0x4 - core index']
  #allocation1 [shape = 'u32[144,128]{1,0:T(1,128)}', space=vmem, size = 0x12000, scoped, tag = 'internal scratch']
  #allocation2 [shape = 'f32[1,1]{1,0:T(1,128)S(1)}', space=vmem, size = 0x200, scoped, tag = 'scoped memory for distance_net_forward.1']
  %s0 = inlined_call_operand.vmem [shape: bf16[1,16,128], index: 0, kind: input, shape index: {}]
  %s1 = inlined_call_operand.vmem [shape: bf16[128,64], index: 1, kind: input, shape index: {}]
  %s2 = inlined_call_operand.vmem [shape: f32[1,64], index: 2, kind: input, shape index: {}]
  %s3 = inlined_call_operand.vmem [shape: bf16[64,128], index: 3, kind: input, shape index: {}]
  %s4 = inlined_call_operand.vmem [shape: f32[1,128], index: 4, kind: input, shape index: {}]
  %s5 = inlined_call_operand.vmem [shape: bf16[128,256], index: 5, kind: input, shape index: {}]
  %s6 = inlined_call_operand.vmem [shape: f32[1,256], index: 6, kind: input, shape index: {}]
  %s7 = inlined_call_operand.vmem [shape: f32[1,256], index: 7, kind: input, shape index: {}]
  %s8 = inlined_call_operand.vmem [shape: f32[1,256], index: 8, kind: input, shape index: {}]
  %s9 = inlined_call_operand.<no memory space> [shape: f32[1,1], index: 9, kind: input, shape index: {}]
  %s10 = inlined_call_operand.vmem [shape: f32[8,1], index: 10, kind: output, shape index: {}]
  %s11 = sld [smem:[#allocation0]]
  $region50: #{distance_net_forward.1} parent=0
    _
  %s13 = ssub.s32 1, %s11
  %s14 = scalar_select 0, %s13, %s11
  %v15 = vstv %s9
  %16 = vst [vmem:[#allocation2] sm:$0x1] %v15
  // Predicated region
  $region2: #{distance_net_forward.1} parent=0 // pred_check
    _
  $region3: #{distance_net_forward.1} parent=0 // pred_check_branch
    %18 = sbr.rel (0) target = $region5
  $region4: #{distance_net_forward.1} parent=0 // pred_region
    _
  $region5: #{distance_net_forward.1} parent=0 // pred_fallthru
    _
  // Predicated region
  $region6: #{distance_net_forward.1} parent=0 // pred_check
    _
  $region7: #{distance_net_forward.1} parent=0 // pred_check_branch
    %20 = sbr.rel (0) target = $region9
  $region8: #{distance_net_forward.1} parent=0 // pred_region
    _
  $region9: #{distance_net_forward.1} parent=0 // pred_fallthru
    _
  // Predicated region
  $region10: #{distance_net_forward.1} parent=0 // pred_check
    _
  $region11: #{distance_net_forward.1} parent=0 // pred_check_branch
    %22 = sbr.rel (0) target = $region13
  $region12: #{distance_net_forward.1} parent=0 // pred_region
    _
  $region13: #{distance_net_forward.1} parent=0 // pred_fallthru
    _
  // Predicated region
  $region14: #{distance_net_forward.1} parent=0 // pred_check
    _
  $region15: #{distance_net_forward.1} parent=0 // pred_check_branch
    %24 = sbr.rel (0) target = $region17
  $region16: #{distance_net_forward.1} parent=0 // pred_region
    _
  $region17: #{distance_net_forward.1} parent=0 // pred_fallthru
    _
  // Predicated region
  $region18: #{distance_net_forward.1} parent=0 // pred_check
    _
  $region19: #{distance_net_forward.1} parent=0 // pred_check_branch
    %26 = sbr.rel (0) target = $region21
  $region20: #{distance_net_forward.1} parent=0 // pred_region
    _
  $region21: #{distance_net_forward.1} parent=0 // pred_fallthru
    _
  // Predicated region
  $region22: #{distance_net_forward.1} parent=0 // pred_check
    _
  $region23: #{distance_net_forward.1} parent=0 // pred_check_branch
    %28 = sbr.rel (0) target = $region25
  $region24: #{distance_net_forward.1} parent=0 // pred_region
    _
  $region25: #{distance_net_forward.1} parent=0 // pred_fallthru
    _
  // Predicated region
  $region26: #{distance_net_forward.1} parent=0 // pred_check
    _
  $region27: #{distance_net_forward.1} parent=0 // pred_check_branch
    %30 = sbr.rel (0) target = $region29
  $region28: #{distance_net_forward.1} parent=0 // pred_region
    _
  $region29: #{distance_net_forward.1} parent=0 // pred_fallthru
    _
  // Predicated region
  $region30: #{distance_net_forward.1} parent=0 // pred_check
    _
  $region31: #{distance_net_forward.1} parent=0 // pred_check_branch
    %32 = sbr.rel (0) target = $region33
  $region32: #{distance_net_forward.1} parent=0 // pred_region
    _
  $region33: #{distance_net_forward.1} parent=0 // pred_fallthru
    _
  // Predicated region
  $region34: #{distance_net_forward.1} parent=0 // pred_check
    _
  $region35: #{distance_net_forward.1} parent=0 // pred_check_branch
    %34 = sbr.rel (0) target = $region37
  $region36: #{distance_net_forward.1} parent=0 // pred_region
    _
  $region37: #{distance_net_forward.1} parent=0 // pred_fallthru
    _
  // Predicated region
  $region38: #{distance_net_forward.1} parent=0 // pred_check
    _
  $region39: #{distance_net_forward.1} parent=0 // pred_check_branch
    %36 = sbr.rel (0) target = $region41
  $region40: #{distance_net_forward.1} parent=0 // pred_region
    _
  $region41: #{distance_net_forward.1} parent=0 // pred_fallthru
    _
  %v38 = vld [vmem:[%s0] sm:$0xf]
  %v39 = vld [vmem:[%s0 + $0x4] sm:$0xf]
  %v40 = vld [vmem:[%s1] sm:$0xf]
  %v41 = vld [vmem:[%s1 + $0x4] sm:$0xf]
  %v42 = vld [vmem:[%s1 + $0x8] sm:$0xf]
  %v43 = vld [vmem:[%s1 + $0xc] sm:$0xf]
  %v44 = vld [vmem:[%s1 + $0x10] sm:$0xf]
  %v45 = vld [vmem:[%s1 + $0x14] sm:$0xf]
  %v46 = vld [vmem:[%s1 + $0x18] sm:$0xf]
  %v47 = vld [vmem:[%s1 + $0x1c] sm:$0xf]
  %v48 = vld [vmem:[%s1 + $0x20] sm:$0xf]
  %v49 = vld [vmem:[%s1 + $0x24] sm:$0xf]
  %v50 = vld [vmem:[%s1 + $0x28] sm:$0xf]
  %v51 = vld [vmem:[%s1 + $0x2c] sm:$0xf]
  %v52 = vld [vmem:[%s1 + $0x30] sm:$0xf]
  %v53 = vld [vmem:[%s1 + $0x34] sm:$0xf]
  %v54 = vld [vmem:[%s1 + $0x38] sm:$0xf]
  %v55 = vld [vmem:[%s1 + $0x3c] sm:$0xf]
  %v56 = vld [vmem:[%s2] sm:$0x1]
  %v58 = vlaneseq
  %v59 = vshrl.u32 %v58, 7
  %v60 = vsub.s32 0, %v59
  %v61 = vrot.slane %v56, %v60
  %v65 = vunpack.c.l.b16 %v38
  %v66 = vunpack.c.l.b16 %v39
  %v67 = vpack.c.b16 %v66, %v65
  %v85 = vunpack.c.l.b16 %v40
  %v86 = vunpack.c.l.b16 %v41
  %v87 = vunpack.c.l.b16 %v42
  %v88 = vunpack.c.l.b16 %v43
  %v89 = vunpack.c.l.b16 %v44
  %v90 = vunpack.c.l.b16 %v45
  %v91 = vunpack.c.l.b16 %v46
  %v92 = vunpack.c.l.b16 %v47
  %v93 = vunpack.c.l.b16 %v48
  %v94 = vunpack.c.l.b16 %v49
  %v95 = vunpack.c.l.b16 %v50
  %v96 = vunpack.c.l.b16 %v51
  %v97 = vunpack.c.l.b16 %v52
  %v98 = vunpack.c.l.b16 %v53
  %v99 = vunpack.c.l.b16 %v54
  %v100 = vunpack.c.l.b16 %v55
  %v101 = vpack.c.b16 %v86, %v85
  %v102 = vpack.c.b16 %v88, %v87
  %v103 = vpack.c.b16 %v90, %v89
  %v104 = vpack.c.b16 %v92, %v91
  %v105 = vpack.c.b16 %v94, %v93
  %v106 = vpack.c.b16 %v96, %v95
  %v107 = vpack.c.b16 %v98, %v97
  %v108 = vpack.c.b16 %v100, %v99
  %117 = vmatprep.subr.bf16.mxu0 0
  %118 = vmatpush1.bf16.msra.mxu0 %v101
  %119 = vmatprep.subr.bf16.mxu0 0
  %120 = vmatpush1.bf16.msra.mxu0 %v102
  %121 = vmatprep.subr.bf16.mxu0 0
  %122 = vmatpush1.bf16.msra.mxu0 %v103
  %123 = vmatprep.subr.bf16.mxu0 0
  %124 = vmatpush1.bf16.msra.mxu0 %v104
  %125 = vmatprep.subr.bf16.mxu0 0
  %126 = vmatpush1.bf16.msra.mxu0 %v105
  %127 = vmatprep.subr.bf16.mxu0 0
  %128 = vmatpush1.bf16.msra.mxu0 %v106
  %129 = vmatprep.subr.bf16.mxu0 0
  %130 = vmatpush1.bf16.msra.mxu0 %v107
  %131 = vmatprep.subr.bf16.mxu0 0
  %132 = vmatpush1.bf16.msra.mxu0 %v108
  %133 = vmatprep.subr.bf16.mxu0 0
  %134 = vmatpush1.bf16.msra.mxu0 0
  %135 = vmatprep.subr.bf16.mxu0 0
  %136 = vmatpush1.bf16.msra.mxu0 0
  %137 = vmatprep.subr.bf16.mxu0 0
  %138 = vmatpush1.bf16.msra.mxu0 0
  %139 = vmatprep.subr.bf16.mxu0 0
  %140 = vmatpush1.bf16.msra.mxu0 0
  %141 = vmatprep.subr.bf16.mxu0 0
  %142 = vmatpush1.bf16.msra.mxu0 0
  %143 = vmatprep.subr.bf16.mxu0 0
  %144 = vmatpush1.bf16.msra.mxu0 0
  %145 = vmatprep.subr.bf16.mxu0 0
  %146 = vmatpush1.bf16.msra.mxu0 0
  %147 = vmatprep.subr.bf16.mxu0 0
  %148 = vmatpush1.bf16.msra.mxu0 0
  %149 = vmatprep.mubr.bf16.mxu0 0
  %150 = vmatmul.mubr.bf16.gmra.mrb[0].mxu0 %v67
  %v151 = vpop.f32.mrb[0].mxu0
  %v152 = vadd.f32 %v61, %v151
  %v153 = vpop.f32.mrb[0].mxu0
  %v154 = vpop.f32.mrb[0].mxu0
  %v155 = vadd.f32 %v61, %v154
  %v156 = vpop.f32.mrb[0].mxu0
  %157 = vdwg.mxu0
  %vm158 = vcmp.ge.f32.partialorder %v152, 0.0
  %vm159 = vcmp.ge.f32.partialorder %v155, 0.0
  %v160 = vmul.f32 %v152, 0.2
  %v161 = vmul.f32 %v155, 0.2
  %v162 = vsel %vm158, %v152, %v160
  %v163 = vsel %vm159, %v155, %v161
  %v164 = vpack.c.bf16 %v163, %v162
  %v165 = vld [vmem:[%s3] sm:$0xf]
  %v166 = vld [vmem:[%s3 + $0x4] sm:$0xf]
  %v167 = vld [vmem:[%s3 + $0x8] sm:$0xf]
  %v168 = vld [vmem:[%s3 + $0xc] sm:$0xf]
  %v169 = vld [vmem:[%s3 + $0x10] sm:$0xf]
  %v170 = vld [vmem:[%s3 + $0x14] sm:$0xf]
  %v171 = vld [vmem:[%s3 + $0x18] sm:$0xf]
  %v172 = vld [vmem:[%s3 + $0x1c] sm:$0xf]
  %v173 = vld [vmem:[%s4] sm:$0x1]
  %v175 = vlaneseq
  %v176 = vshrl.u32 %v175, 7
  %v177 = vsub.s32 0, %v176
  %v178 = vrot.slane %v173, %v177
  %v188 = vunpack.c.l.b16 %v165
  %v189 = vunpack.c.l.b16 %v166
  %v190 = vunpack.c.l.b16 %v167
  %v191 = vunpack.c.l.b16 %v168
  %v192 = vunpack.c.l.b16 %v169
  %v193 = vunpack.c.l.b16 %v170
  %v194 = vunpack.c.l.b16 %v171
  %v195 = vunpack.c.l.b16 %v172
  %v196 = vpack.c.b16 %v189, %v188
  %v197 = vpack.c.b16 %v191, %v190
  %v198 = vpack.c.b16 %v193, %v192
  %v199 = vpack.c.b16 %v195, %v194
  %vm204 = vcmask 523264
  %v206 = vsel %vm204, %v164, 0
  %208 = vmatprep.subr.bf16.mxu0 0
  %209 = vmatpush1.bf16.msra.mxu0 %v196
  %210 = vmatprep.subr.bf16.mxu0 0
  %211 = vmatpush1.bf16.msra.mxu0 %v197
  %212 = vmatprep.subr.bf16.mxu0 0
  %213 = vmatpush1.bf16.msra.mxu0 %v198
  %214 = vmatprep.subr.bf16.mxu0 0
  %215 = vmatpush1.bf16.msra.mxu0 %v199
  %216 = vmatprep.subr.bf16.mxu0 0
  %217 = vmatpush1.bf16.msra.mxu0 0
  %218 = vmatprep.subr.bf16.mxu0 0
  %219 = vmatpush1.bf16.msra.mxu0 0
  %220 = vmatprep.subr.bf16.mxu0 0
  %221 = vmatpush1.bf16.msra.mxu0 0
  %222 = vmatprep.subr.bf16.mxu0 0
  %223 = vmatpush1.bf16.msra.mxu0 0
  %224 = vmatprep.subr.bf16.mxu0 0
  %225 = vmatpush1.bf16.msra.mxu0 0
  %226 = vmatprep.subr.bf16.mxu0 0
  %227 = vmatpush1.bf16.msra.mxu0 0
  %228 = vmatprep.subr.bf16.mxu0 0
  %229 = vmatpush1.bf16.msra.mxu0 0
  %230 = vmatprep.subr.bf16.mxu0 0
  %231 = vmatpush1.bf16.msra.mxu0 0
  %232 = vmatprep.subr.bf16.mxu0 0
  %233 = vmatpush1.bf16.msra.mxu0 0
  %234 = vmatprep.subr.bf16.mxu0 0
  %235 = vmatpush1.bf16.msra.mxu0 0
  %236 = vmatprep.subr.bf16.mxu0 0
  %237 = vmatpush1.bf16.msra.mxu0 0
  %238 = vmatprep.subr.bf16.mxu0 0
  %239 = vmatpush1.bf16.msra.mxu0 0
  %240 = vmatprep.mubr.bf16.mxu0 0
  %241 = vmatmul.mubr.bf16.gmra.mrb[0].mxu0 %v206
  %v242 = vpop.f32.mrb[0].mxu0
  %v243 = vadd.f32 %v178, %v242
  %v244 = vpop.f32.mrb[0].mxu0
  %v245 = vpop.f32.mrb[0].mxu0
  %v246 = vadd.f32 %v178, %v245
  %v247 = vpop.f32.mrb[0].mxu0
  %248 = vdwg.mxu0
  %vm249 = vcmp.ge.f32.partialorder %v243, 0.0
  %vm250 = vcmp.ge.f32.partialorder %v246, 0.0
  %v251 = vmul.f32 %v243, 0.2
  %v252 = vmul.f32 %v246, 0.2
  %v253 = vsel %vm249, %v243, %v251
  %v254 = vsel %vm250, %v246, %v252
  %v255 = vpack.c.bf16 %v254, %v253
  %v256 = vld [vmem:[%s5] sm:$0xff]
  %v257 = vld [vmem:[%s5 + $0x8] sm:$0xff]
  %v258 = vld [vmem:[%s5 + $0x10] sm:$0xff]
  %v259 = vld [vmem:[%s5 + $0x18] sm:$0xff]
  %v260 = vld [vmem:[%s5 + $0x20] sm:$0xff]
  %v261 = vld [vmem:[%s5 + $0x28] sm:$0xff]
  %v262 = vld [vmem:[%s5 + $0x30] sm:$0xff]
  %v263 = vld [vmem:[%s5 + $0x38] sm:$0xff]
  %v264 = vld [vmem:[%s5 + $0x40] sm:$0xff]
  %v265 = vld [vmem:[%s5 + $0x48] sm:$0xff]
  %v266 = vld [vmem:[%s5 + $0x50] sm:$0xff]
  %v267 = vld [vmem:[%s5 + $0x58] sm:$0xff]
  %v268 = vld [vmem:[%s5 + $0x60] sm:$0xff]
  %v269 = vld [vmem:[%s5 + $0x68] sm:$0xff]
  %v270 = vld [vmem:[%s5 + $0x70] sm:$0xff]
  %v271 = vld [vmem:[%s5 + $0x78] sm:$0xff]
  %v272 = vld [vmem:[%s6] sm:$0x3]
  %v274 = vlaneseq
  %v275 = vshrl.u32 %v274, 7
  %v276 = vsub.s32 0, %v275
  %v277 = vrot.slane %v272, %v276
  %v278 = vlaneseq
  %v279 = vshrl.u32 %v278, 7
  %v280 = vsub.s32 1, %v279
  %v281 = vrot.slane %v272, %v280
  %v300 = vunpack.c.l.b16 %v256
  %v301 = vunpack.c.h.b16 %v256
  %v302 = vunpack.c.l.b16 %v257
  %v303 = vunpack.c.h.b16 %v257
  %v304 = vunpack.c.l.b16 %v258
  %v305 = vunpack.c.h.b16 %v258
  %v306 = vunpack.c.l.b16 %v259
  %v307 = vunpack.c.h.b16 %v259
  %v308 = vunpack.c.l.b16 %v260
  %v309 = vunpack.c.h.b16 %v260
  %v310 = vunpack.c.l.b16 %v261
  %v311 = vunpack.c.h.b16 %v261
  %v312 = vunpack.c.l.b16 %v262
  %v313 = vunpack.c.h.b16 %v262
  %v314 = vunpack.c.l.b16 %v263
  %v315 = vunpack.c.h.b16 %v263
  %v316 = vunpack.c.l.b16 %v264
  %v317 = vunpack.c.h.b16 %v264
  %v318 = vunpack.c.l.b16 %v265
  %v319 = vunpack.c.h.b16 %v265
  %v320 = vunpack.c.l.b16 %v266
  %v321 = vunpack.c.h.b16 %v266
  %v322 = vunpack.c.l.b16 %v267
  %v323 = vunpack.c.h.b16 %v267
  %v324 = vunpack.c.l.b16 %v268
  %v325 = vunpack.c.h.b16 %v268
  %v326 = vunpack.c.l.b16 %v269
  %v327 = vunpack.c.h.b16 %v269
  %v328 = vunpack.c.l.b16 %v270
  %v329 = vunpack.c.h.b16 %v270
  %v330 = vunpack.c.l.b16 %v271
  %v331 = vunpack.c.h.b16 %v271
  %v332 = vpack.c.b16 %v302, %v300
  %v333 = vpack.c.b16 %v303, %v301
  %v334 = vpack.c.b16 %v306, %v304
  %v335 = vpack.c.b16 %v307, %v305
  %v336 = vpack.c.b16 %v310, %v308
  %v337 = vpack.c.b16 %v311, %v309
  %v338 = vpack.c.b16 %v314, %v312
  %v339 = vpack.c.b16 %v315, %v313
  %v340 = vpack.c.b16 %v318, %v316
  %v341 = vpack.c.b16 %v319, %v317
  %v342 = vpack.c.b16 %v322, %v320
  %v343 = vpack.c.b16 %v323, %v321
  %v344 = vpack.c.b16 %v326, %v324
  %v345 = vpack.c.b16 %v327, %v325
  %v346 = vpack.c.b16 %v330, %v328
  %v347 = vpack.c.b16 %v331, %v329
  %364 = vmatprep.subr.bf16.mxu0 %v333
  %365 = vmatpush1.bf16.msra.mxu0 %v332
  %366 = vmatprep.subr.bf16.mxu0 %v335
  %367 = vmatpush1.bf16.msra.mxu0 %v334
  %368 = vmatprep.subr.bf16.mxu0 %v337
  %369 = vmatpush1.bf16.msra.mxu0 %v336
  %370 = vmatprep.subr.bf16.mxu0 %v339
  %371 = vmatpush1.bf16.msra.mxu0 %v338
  %372 = vmatprep.subr.bf16.mxu0 %v341
  %373 = vmatpush1.bf16.msra.mxu0 %v340
  %374 = vmatprep.subr.bf16.mxu0 %v343
  %375 = vmatpush1.bf16.msra.mxu0 %v342
  %376 = vmatprep.subr.bf16.mxu0 %v345
  %377 = vmatpush1.bf16.msra.mxu0 %v344
  %378 = vmatprep.subr.bf16.mxu0 %v347
  %379 = vmatpush1.bf16.msra.mxu0 %v346
  %380 = vmatprep.subr.bf16.mxu0 0
  %381 = vmatpush1.bf16.msra.mxu0 0
  %382 = vmatprep.subr.bf16.mxu0 0
  %383 = vmatpush1.bf16.msra.mxu0 0
  %384 = vmatprep.subr.bf16.mxu0 0
  %385 = vmatpush1.bf16.msra.mxu0 0
  %386 = vmatprep.subr.bf16.mxu0 0
  %387 = vmatpush1.bf16.msra.mxu0 0
  %388 = vmatprep.subr.bf16.mxu0 0
  %389 = vmatpush1.bf16.msra.mxu0 0
  %390 = vmatprep.subr.bf16.mxu0 0
  %391 = vmatpush1.bf16.msra.mxu0 0
  %392 = vmatprep.subr.bf16.mxu0 0
  %393 = vmatpush1.bf16.msra.mxu0 0
  %394 = vmatprep.subr.bf16.mxu0 0
  %395 = vmatpush1.bf16.msra.mxu0 0
  %396 = vmatprep.mubr.bf16.mxu0 0
  %397 = vmatmul.mubr.bf16.gmra.mrb[0].mxu0 %v255
  %v398 = vpop.f32.mrb[0].mxu0
  %v399 = vadd.f32 %v277, %v398
  %v400 = vpop.f32.mrb[0].mxu0
  %v401 = vadd.f32 %v281, %v400
  %v402 = vpop.f32.mrb[0].mxu0
  %v403 = vadd.f32 %v277, %v402
  %v404 = vpop.f32.mrb[0].mxu0
  %v405 = vadd.f32 %v281, %v404
  %406 = vdwg.mxu0
  %vm407 = vcmp.ge.f32.partialorder %v399, 0.0
  %vm408 = vcmp.ge.f32.partialorder %v401, 0.0
  %vm409 = vcmp.ge.f32.partialorder %v403, 0.0
  %vm410 = vcmp.ge.f32.partialorder %v405, 0.0
  %v411 = vmul.f32 %v399, 0.2
  %v412 = vmul.f32 %v401, 0.2
  %v413 = vmul.f32 %v403, 0.2
  %v414 = vmul.f32 %v405, 0.2
  %v415 = vsel %vm407, %v399, %v411
  %v416 = vsel %vm408, %v401, %v412
  %v417 = vsel %vm409, %v403, %v413
  %v418 = vsel %vm410, %v405, %v414
  %v419 = vld [vmem:[%s7] sm:$0x3]
  %v421 = vlaneseq
  %v422 = vshrl.u32 %v421, 7
  %v423 = vsub.s32 0, %v422
  %v424 = vrot.slane %v419, %v423
  %v425 = vlaneseq
  %v426 = vshrl.u32 %v425, 7
  %v427 = vsub.s32 1, %v426
  %v428 = vrot.slane %v419, %v427
  %v431 = vmul.f32 %v415, %v424
  %v432 = vmul.f32 %v416, %v428
  %v433 = vld [vmem:[%s8] sm:$0x3]
  %v435 = vlaneseq
  %v436 = vshrl.u32 %v435, 7
  %v437 = vsub.s32 0, %v436
  %v438 = vrot.slane %v433, %v437
  %v439 = vlaneseq
  %v440 = vshrl.u32 %v439, 7
  %v441 = vsub.s32 1, %v440
  %v442 = vrot.slane %v433, %v441
  %v445 = vmul.f32 %v417, %v438
  %v446 = vmul.f32 %v418, %v442
  %v447 = vadd.f32 %v431, %v445
  %v448 = vadd.f32 %v432, %v446
  %v449 = vadd.f32 %v447, %v448
  %450 = vadd.xlane.f32.xlu0 %v449
  %v451 = vpop.xlane.xlu0 %450
  %v452 = vld [vmem:[#allocation2] sm:$0x1]
  %v454 = vlaneseq
  %v455 = vshrl.u32 %v454, 7
  %v456 = vsub.s32 0, %v455
  %v457 = vrot.slane %v452, %v456
  %v459 = vadd.f32 %v451, %v457
  %vm460 = vcmask 7168
  %461 = vst.msk [vmem:[%s10] sm:$0xff] %vm460, %v459
  // Predicated region
  $region42: #{distance_net_forward.1} parent=0 // pred_check
    _
  $region43: #{distance_net_forward.1} parent=0 // pred_check_branch
    %463 = sbr.rel (0) target = $region45
  $region44: #{distance_net_forward.1} parent=0 // pred_region
    _
  $region45: #{distance_net_forward.1} parent=0 // pred_fallthru
    _
  // Predicated region
  $region46: #{distance_net_forward.1} parent=0 // pred_check
    _
  $region47: #{distance_net_forward.1} parent=0 // pred_check_branch
    %465 = sbr.rel (0) target = $region49
  $region48: #{distance_net_forward.1} parent=0 // pred_region
    _
  $region49: #{distance_net_forward.1} parent=0 // pred_fallthru
    _

</llo_original>
